<compile_context>
chip_gen: v7x
topology: tpu7x:2x2x1
jax: 0.10.0
libtpu: 0.0.40
codegen_flags: <defaults>
</compile_context>

<pallas_src>
import functools

import jax
import jax.numpy as jnp
from jax.experimental import pallas as pl
from jax.experimental.pallas import tpu as pltpu

ALPHA = 1.0
GAMMA = 2.0

_LANES = 128
_SUBLANES = 8
_TILE_BYTES_TARGET = 2 * 1024 * 1024   # f32 working-copy budget per input tile
_MAX_TM = 1024


def _choose_tm(n, c):
    """Rows per tile so a (TM, C) f32 working copy stays within ~2 MiB."""
    rows = max(_SUBLANES, _TILE_BYTES_TARGET // (c * 4))
    rows = min(rows, _MAX_TM)
    if rows >= n:
        return n
    return max(_SUBLANES, (rows // _SUBLANES) * _SUBLANES)


def _focal_partial_kernel(logits_ref, tgt_ref, out_ref, *, n_valid, tm):
    """One (TM, C) tile of logits -> per-tile sum of (logsumexp - x[target])."""
    x = logits_ref[...].astype(jnp.float32)               # (TM, C) f32 compute
    c = x.shape[-1]

    # Numerically stable per-row logsumexp.
    m = jnp.max(x, axis=-1, keepdims=True)                # (TM, 1)
    lse = m + jnp.log(jnp.sum(jnp.exp(x - m), axis=-1, keepdims=True))

    # x[i, targets[i]] via one-hot mask (no per-row gather on TPU).
    col = jax.lax.broadcasted_iota(jnp.int32, (tm, c), 1)
    tgt = tgt_ref[...]                                     # (TM, 1) int32
    picked = jnp.sum(jnp.where(col == tgt, x, 0.0), axis=-1, keepdims=True)

    # Mask rows that are batch padding (N rounded up to a multiple of TM).
    row0 = pl.program_id(0) * tm
    rows = row0 + jax.lax.broadcasted_iota(jnp.int32, (tm, 1), 0)
    per_row = jnp.where(rows < n_valid, lse - picked, 0.0)  # (TM, 1)

    partial = jnp.sum(per_row)                              # scalar
    # Lane-dense (1, 128) output slab -> unmasked vst; wrapper reads lane 0.
    out_ref[...] = jnp.full((1, _LANES), partial, dtype=jnp.float32)


def focal_loss(logits, targets, alpha=ALPHA, gamma=GAMMA, tm=None):
    """logits: (N, C) float (f32 or bf16); targets: (N,) int. Returns scalar."""
    n, c = logits.shape
    if tm is None:
        tm = _choose_tm(n, c)
    num_tiles = pl.cdiv(n, tm)
    n_pad = num_tiles * tm

    tgt2d = targets.astype(jnp.int32).reshape(n, 1)
    if n_pad != n:
        logits = jnp.pad(logits, ((0, n_pad - n), (0, 0)))
        tgt2d = jnp.pad(tgt2d, ((0, n_pad - n), (0, 0)), constant_values=-1)

    kernel = functools.partial(_focal_partial_kernel, n_valid=n, tm=tm)

    partials = pl.pallas_call(
        kernel,
        out_shape=jax.ShapeDtypeStruct((num_tiles, _LANES), jnp.float32),
        grid=(num_tiles,),
        in_specs=[
            pl.BlockSpec((tm, c), lambda i: (i, 0)),
            pl.BlockSpec((tm, 1), lambda i: (i, 0)),
        ],
        out_specs=pl.BlockSpec((1, _LANES), lambda i: (i, 0)),
        compiler_params=pltpu.CompilerParams(
            dimension_semantics=("parallel",),
            vmem_limit_bytes=32 * 1024 * 1024,
        ),
    )(logits, tgt2d)

    # Finalize (scalar work) on the host/XLA side.
    ce = jnp.sum(partials[:, 0]) / jnp.float32(n)
    pt = jnp.exp(-ce)
    one_minus_pt = 1.0 - pt
    if float(gamma) == 2.0:
        weight = one_minus_pt * one_minus_pt          # avoid float pow (log+exp)
    else:
        weight = one_minus_pt ** jnp.float32(gamma)
    return jnp.float32(alpha) * weight * ce


def focal_loss_ref(logits, targets, alpha=ALPHA, gamma=GAMMA):
    # Pure-JAX reference for sanity checking.
    logp = jax.nn.log_softmax(logits.astype(jnp.float32), axis=-1)
    nll = -jnp.take_along_axis(logp, targets[:, None].astype(jnp.int32), axis=-1)
    ce = jnp.mean(nll)
    pt = jnp.exp(-ce)
    return alpha * (1.0 - pt) ** gamma * ce


if __name__ == "__main__":
    key = jax.random.PRNGKey(0)
    k1, k2, k3, k4 = jax.random.split(key, 4)

    # Small single-tile case (matches the module's usage shape-wise).
    N, C = 8, 32
    logits = jax.random.normal(k1, (N, C), dtype=jnp.float32)
    targets = jax.random.randint(k2, (N,), 0, C, dtype=jnp.int32)
    loss = jax.block_until_ready(focal_loss(logits, targets))
    ref = jax.block_until_ready(focal_loss_ref(logits, targets))
    assert jnp.allclose(loss, ref, rtol=1e-5, atol=1e-5), (loss, ref)

    # Multi-tile case with batch padding/masking exercised (tm forced to 8).
    N2, C2 = 20, 32
    logits2 = jax.random.normal(k3, (N2, C2), dtype=jnp.float32)
    targets2 = jax.random.randint(k4, (N2,), 0, C2, dtype=jnp.int32)
    loss2 = jax.block_until_ready(focal_loss(logits2, targets2, tm=8))
    ref2 = jax.block_until_ready(focal_loss_ref(logits2, targets2))
    assert jnp.allclose(loss2, ref2, rtol=1e-5, atol=1e-5), (loss2, ref2)

    print("KERNEL_OK")
</pallas_src>

<mosaic_0001>
module attributes {stable_mosaic.version = 11 : i64} {
  func.func @_focal_partial_kernel(%arg0: i32, %arg1: memref<8x32xf32, #tpu.memory_space<vmem>>, %arg2: memref<8x1xi32, #tpu.memory_space<vmem>>, %arg3: memref<1x128xf32, #tpu.memory_space<vmem>>) attributes {dimension_semantics = [#tpu.dimension_semantics<parallel>], iteration_bounds = array<i64: 1>, scalar_prefetch = 0 : i64, scratch_operands = 0 : i64, tpu.core_type = #tpu.core_type<tc>, window_params = [{transform_indices = @transform_0, window_bounds = array<i64: 8, 32>}, {transform_indices = @transform_1, window_bounds = array<i64: 8, 1>}, {transform_indices = @transform_2, window_bounds = array<i64: 1, 128>}]} {
    %c0 = arith.constant 0 : index
    %c0_0 = arith.constant 0 : index
    %0 = vector.load %arg1[%c0, %c0_0] : memref<8x32xf32, #tpu.memory_space<vmem>>, vector<8x32xf32>
    %cst = arith.constant dense<0xFF800000> : vector<8xf32>
    %1 = vector.multi_reduction <maximumf>, %0, %cst [1] : vector<8x32xf32> to vector<8xf32>
    %2 = vector.shape_cast %1 : vector<8xf32> to vector<8x1xf32>
    %3 = vector.broadcast %2 : vector<8x1xf32> to vector<8x32xf32>
    %4 = arith.subf %0, %3 : vector<8x32xf32>
    %5 = math.exp %4 : vector<8x32xf32>
    %cst_1 = arith.constant dense<0.000000e+00> : vector<8xf32>
    %6 = vector.multi_reduction <add>, %5, %cst_1 [1] : vector<8x32xf32> to vector<8xf32>
    %7 = vector.shape_cast %6 : vector<8xf32> to vector<8x1xf32>
    %8 = math.log %7 : vector<8x1xf32>
    %9 = arith.addf %2, %8 : vector<8x1xf32>
    %10 = tpu.iota {dimensions = array<i32: 1>} : vector<8x32xi32>
    %c0_2 = arith.constant 0 : index
    %c0_3 = arith.constant 0 : index
    %11 = vector.load %arg2[%c0_2, %c0_3] : memref<8x1xi32, #tpu.memory_space<vmem>>, vector<8x1xi32>
    %12 = vector.broadcast %11 : vector<8x1xi32> to vector<8x32xi32>
    %13 = arith.cmpi eq, %10, %12 : vector<8x32xi32>
    %cst_4 = arith.constant 0.000000e+00 : f32
    %14 = vector.broadcast %cst_4 : f32 to vector<8x32xf32>
    %15 = arith.select %13, %0, %14 : vector<8x32xi1>, vector<8x32xf32>
    %cst_5 = arith.constant dense<0.000000e+00> : vector<8xf32>
    %16 = vector.multi_reduction <add>, %15, %cst_5 [1] : vector<8x32xf32> to vector<8xf32>
    %17 = vector.shape_cast %16 : vector<8xf32> to vector<8x1xf32>
    %c8_i32 = arith.constant 8 : i32
    %18 = arith.muli %arg0, %c8_i32 : i32
    %19 = tpu.iota {dimensions = array<i32: 0>} : vector<8x1xi32>
    %20 = vector.broadcast %18 : i32 to vector<8x1xi32>
    %21 = arith.addi %20, %19 : vector<8x1xi32>
    %c8_i32_6 = arith.constant 8 : i32
    %22 = vector.broadcast %c8_i32_6 : i32 to vector<8x1xi32>
    %23 = arith.cmpi slt, %21, %22 : vector<8x1xi32>
    %24 = arith.subf %9, %17 : vector<8x1xf32>
    %cst_7 = arith.constant 0.000000e+00 : f32
    %25 = vector.broadcast %cst_7 : f32 to vector<8x1xf32>
    %26 = arith.select %23, %24, %25 : vector<8x1xi1>, vector<8x1xf32>
    %27 = vector.shape_cast %26 : vector<8x1xf32> to vector<1x8x1xf32>
    %cst_8 = arith.constant dense<0.000000e+00> : vector<1xf32>
    %28 = vector.multi_reduction <add>, %27, %cst_8 [1, 2] : vector<1x8x1xf32> to vector<1xf32>
    %29 = vector.shape_cast %28 : vector<1xf32> to vector<1x1x1xf32>
    %30 = vector.extract %29[0, 0, 0] : f32 from vector<1x1x1xf32>
    %31 = vector.broadcast %30 : f32 to vector<1x128xf32>
    %c0_9 = arith.constant 0 : index
    %c0_10 = arith.constant 0 : index
    %32 = vector.load %arg3[%c0_9, %c0_10] : memref<1x128xf32, #tpu.memory_space<vmem>>, vector<1x128xf32>
    tpu.vector_store %arg3[%c0_9, %c0_10], %31 {strides = array<i32>} : memref<1x128xf32, #tpu.memory_space<vmem>>, vector<1x128xf32>,
    return
  }
  func.func @transform_0(%arg0: i32) -> (i32, i32) {
    %c0_i32 = arith.constant 0 : i32
    %c0_i32_0 = arith.constant 0 : i32
    return %arg0, %c0_i32 : i32, i32
  }
  func.func @transform_1(%arg0: i32) -> (i32, i32) {
    %c0_i32 = arith.constant 0 : i32
    %c0_i32_0 = arith.constant 0 : i32
    return %arg0, %c0_i32 : i32, i32
  }
  func.func @transform_2(%arg0: i32) -> (i32, i32) {
    %c0_i32 = arith.constant 0 : i32
    %c0_i32_0 = arith.constant 0 : i32
    return %arg0, %c0_i32 : i32, i32
  }
}

</mosaic_0001>

<llo_original>
// kernel: tpu_custom_call.1
$region0: #{tpu_custom_call.1}
  #allocation0 [shape = 'u32[]', space=smem, size = 0x4, offset = 0x4, fixed_abs, tag = 'smem constant byte address 0x4 - core index']
  #allocation1 [shape = 'u32[144,128]{1,0:T(1,128)}', space=vmem, size = 0x12000, scoped, tag = 'internal scratch']
  %s0 = inlined_call_operand.vmem [shape: f32[8,32], index: 0, kind: input, shape index: {}]
  %s1 = inlined_call_operand.vmem [shape: s32[8,1], index: 1, kind: input, shape index: {}]
  %s2 = inlined_call_operand.hbm [shape: f32[1,128], index: 2, kind: output, shape index: {}]
  %s3 = sld [smem:[#allocation0]]
  $region18: #{tpu_custom_call.1} parent=0
    _
  %s5 = ssub.s32 1, %s3
  %s6 = scalar_select 0, %s5, %s3
  $region1: #{tpu_custom_call.1} parent=0
    #allocation2 [shape = 'u8[512]{0}', space=vmem, size = 0x400, scoped, tag = 'output window, operand 0, single buffered']
    #allocation3 [shape = 's32[1]{0}', space=sflag, size = 0x4, scoped, tag = 'scoped memory for tpu_custom_call.1']
    %7 = vsyncpa [#allocation3], 0
    // Predicated region
    $region2: #{tpu_custom_call.1} parent=1 // pred_check
      _
    $region3: #{tpu_custom_call.1} parent=1 // pred_check_branch
      %9 = sbr.rel (0) target = $region5
    $region4: #{tpu_custom_call.1} parent=1 // pred_region
      _
    $region5: #{tpu_custom_call.1} parent=1 // pred_fallthru
      _
    // Predicated region
    $region6: #{tpu_custom_call.1} parent=1 // pred_check
      _
    $region7: #{tpu_custom_call.1} parent=1 // pred_check_branch
      %11 = sbr.rel (0) target = $region9
    $region8: #{tpu_custom_call.1} parent=1 // pred_region
      _
    $region9: #{tpu_custom_call.1} parent=1 // pred_fallthru
      _
    %v12 = vld [vmem:[%s0] sm:$0xff]
    %vm13 = vcmask 261120
    %v14 = vsel %vm13, %v12, -inf
    %15 = vmax.xlane.f32.xlu0 %v14
    %v16 = vpop.xlane.xlu0 %15
    %v17 = vsub.f32 %v12, %v16
    %v18 = vmul.f32 %v17, 1.442695
    %v19 = vpow.pop %v18
    %v20 = vsel %vm13, %v19, 0.0
    %21 = vadd.xlane.f32.xlu0 %v20
    %v22 = vpop.xlane.xlu0 %21
    %v23 = vlog2.pop %v22
    %v24 = vmul.f32 %v23, 0.6931472
    %v25 = vadd.f32 %v16, %v24
    %v26 = vlaneseq
    %v27 = vand.u32 %v26, 127
    %v28 = vld [vmem:[%s1] sm:$0xff]
    %29 = vset.pattern.permute.xlu0 0
    %30 = vperm.xlu0 %29, %v28
    %v31 = vpop.permute.xlu0 %30
    %vm32 = vcmp.eq.s32.totalorder %v27, %v31
    %v33 = vsel %vm32, %v12, 0.0
    %v34 = vsel %vm13, %v33, 0.0
    %35 = vadd.xlane.f32.xlu0 %v34
    %v36 = vpop.xlane.xlu0 %35
    %s37 = smul.u32 0, 8
    %v38 = vlaneseq
    %v39 = vshrl.u32 %v38, 7
    %v40 = vstv %s37
    %v41 = vadd.s32 %v40, %v39
    %vm42 = vcmp.lt.s32.totalorder %v41, 8
    %v43 = vsub.f32 %v25, %v36
    %v44 = vsel %vm42, %v43, 0.0
    %vm45 = vcmask 7168
    %v46 = vsel %vm45, %v44, 0.0
    %47 = vadd.xlane.f32.xlu0 %v46
    %v48 = vpop.xlane.xlu0 %47
    %v49 = vrot.slane %v48, 4
    %v50 = vadd.f32 %v48, %v49
    %v51 = vrot.slane %v50, 2
    %v52 = vadd.f32 %v50, %v51
    %v53 = vrot.slane %v52, 1
    %v54 = vadd.f32 %v52, %v53
    %s55 = vtos %v54
    %v56 = vstv %s55
    %57 = vst [vmem:[#allocation2] sm:$0x1] %v56
    // Predicated region
    $region10: #{tpu_custom_call.1} parent=1 // pred_check
      _
    $region11: #{tpu_custom_call.1} parent=1 // pred_check_branch
      %59 = sbr.rel (0) target = $region13
    $region12: #{tpu_custom_call.1} parent=1 // pred_region
      %s61 = ssub.s32 16, 16
      %62 = vsyncadd [#allocation3], %s61
      %s64 = sshll.u32 [#allocation2], 4
      %s65 = int_to_ptr.vmem [resolvable:$true] %s64
      %67 = dma.vmem_to_hbm [thread:$0]  %s65, 16, %s2, [#allocation3]
    $region13: #{tpu_custom_call.1} parent=1 // pred_fallthru
      _
    // Predicated region
    $region14: #{tpu_custom_call.1} parent=1 // pred_check
      _
    $region15: #{tpu_custom_call.1} parent=1 // pred_check_branch
      %69 = sbr.rel (0) target = $region17
    $region16: #{tpu_custom_call.1} parent=1 // pred_region
      %70 = dma.done [#allocation3], 16
    $region17: #{tpu_custom_call.1} parent=1 // pred_fallthru
      _
    %71 = vsyncpa [#allocation3], 1

</llo_original>
